<compile_context>
chip_gen: v5e
topology: v5e:2x2
jax: 0.10.0
libtpu: 0.0.40
codegen_flags: <defaults>
</compile_context>

<pallas_src>
import functools
import numpy as np
import jax
import jax.numpy as jnp
from jax.experimental import pallas as pl
from jax.experimental.pallas import tpu as pltpu


# ----------------------------------------------------------------------------
# Fused Pallas kernel
#   SMEM : wo_eff (num_out, C)   bo (1, num_out)
#   VMEM : zc (1, C*Di, Hi*Wi)   mhwT-tile (Hi*Wi, THW)   md-tile (TD, Di)
#   out  : (1, num_out, TD, THW)
#   scr  : zhw (C, Di, THW)  -- conv1 + HW-upsampled slab, resident per (hw,n)
# ----------------------------------------------------------------------------
def _pvp_kernel(wo_ref, bo_ref, zc_ref, mhw_ref, md_ref, out_ref, zhw_ref,
                *, C, Di, num_out):
    d = pl.program_id(2)

    # Phase 1 (once per (hw-tile, batch)): ONE stacked MXU matmul upsamples
    # H and W for all C*Di rows of this output tile.
    @pl.when(d == 0)
    def _():
        up = jnp.dot(zc_ref[0], mhw_ref[...],
                     preferred_element_type=jnp.float32)      # (C*Di, THW) f32
        for c in range(C):
            zhw_ref[c] = up[c * Di:(c + 1) * Di, :].astype(zhw_ref.dtype)

    # Phase 2 (every depth tile): depth interpolation on the MXU, ReLU, then
    # the folded out-conv as an interleaved accumulation -- only num_out
    # accumulators (+ one u tile) are ever live.
    md = md_ref[...]
    accs = [None] * num_out
    for c in range(C):
        u = jnp.dot(md, zhw_ref[c], preferred_element_type=jnp.float32)  # (TD, THW)
        u = jnp.maximum(u, 0.0)
        for o in range(num_out):
            t = u * wo_ref[o, c]
            accs[o] = t if c == 0 else accs[o] + t
    for o in range(num_out):
        out_ref[0, o] = (accs[o] + bo_ref[0, o]).astype(out_ref.dtype)


# ----------------------------------------------------------------------------
# Host-side helpers
# ----------------------------------------------------------------------------
def _trilinear_matrix(in_size, out_size):
    """Per-axis interpolation matrix matching nn.Upsample(mode='trilinear',
    align_corners=False): half-pixel mapping, negative coords clamped to 0.
    Rows sum to 1, so bias-before-upsample == bias-after-upsample."""
    dst = np.arange(out_size)
    real = (dst + 0.5) * (float(in_size) / float(out_size)) - 0.5
    real = np.maximum(real, 0.0)
    i0 = np.minimum(np.floor(real).astype(np.int64), in_size - 1)
    i1 = np.minimum(i0 + 1, in_size - 1)
    l1 = (real - i0).astype(np.float32)
    l0 = (1.0 - l1).astype(np.float32)
    M = np.zeros((out_size, in_size), np.float32)
    np.add.at(M, (dst, i0), l0)
    np.add.at(M, (dst, i1), l1)
    return M


def _vmem_capacity_bytes():
    try:
        cap = int(pltpu.get_tpu_info().vmem_capacity_bytes)
        if cap >= (16 << 20):
            return cap
    except Exception:
        pass
    return 64 << 20  # conservative (v7x-sized) fallback


def _tile_candidates(total, align, cap):
    """Divisor-or-full tile sizes, aligned, capped, descending (best first)."""
    cands = set()
    t = align
    while t <= total:
        if total % t == 0:
            cands.add(t)
        t += align
    cands.add(total)  # full dim is always a legal block shape
    capped = [c for c in cands if c <= cap]
    if not capped:
        capped = [min(cands)]
    return sorted(capped, reverse=True)


def _vmem_estimate(thw, td, *, HiWi, CDi, num_out, interp_bytes):
    mhw = 2 * HiWi * thw * interp_bytes              # double-buffered kron tile
    zcb = 2 * CDi * max(HiWi, 128) * interp_bytes    # double-buffered conv slab
    mdb = 2 * max(td, 8) * 128 * interp_bytes        # depth operator tile
    outb = 2 * num_out * max(td, 8) * thw * 4        # double-buffered output
    zhw = CDi * thw * 4                              # resident scratch (upper bound)
    ph1 = CDi * thw * 4                              # f32 matmul result (phase 1)
    acc = (num_out + 2) * max(td, 8) * thw * 4       # live accumulators + u
    return mhw + zcb + mdb + outb + zhw + ph1 + acc + (2 << 20)


def _choose_tiles(*, HiWi, HoWo, Do, CDi, num_out, interp_bytes, thw_cap, td_cap):
    cap = _vmem_capacity_bytes()
    budget = int(0.45 * cap)
    vmem_limit = max(32 << 20, min(int(0.9 * cap), 112 << 20))
    thw_cands = _tile_candidates(HoWo, 128, thw_cap)
    td_cands = _tile_candidates(Do, 8, td_cap)
    for thw in thw_cands:
        for td in td_cands:
            if _vmem_estimate(thw, td, HiWi=HiWi, CDi=CDi, num_out=num_out,
                              interp_bytes=interp_bytes) <= budget:
                return thw, td, vmem_limit
    return thw_cands[-1], td_cands[-1], vmem_limit


def pvp_forward(x, params, size, *, interp_dtype=jnp.bfloat16,
                thw_cap=4096, td_cap=64):
    """x: (N, Cin, D, H, W) f32 -> (N, num_out, size[0], size[1], size[2]) f32."""
    x = x.astype(jnp.float32)
    N, Cin, Di, Hi, Wi = x.shape
    Do, Ho, Wo = size

    w1 = params["w1"].astype(jnp.float32)        # (C, Cin)
    b1 = params["b1"].astype(jnp.float32)        # (C,)
    wout = params["wout"].astype(jnp.float32)    # (num_out, 4*C)
    bout = params["bout"].astype(jnp.float32)    # (num_out,)
    C = w1.shape[0]
    num_out = wout.shape[0]

    # Fold cat([y,y,y,y]) @ wout into a single (num_out, C) weight (exact).
    wout_eff = wout.reshape(num_out, 4, C).sum(axis=1)

    # 1x1x1 conv (+bias) on the small pre-upsample tensor, done as an XLA
    # einsum so the kernel's stacked matmuls get a (c,d)-major / (h,w)-lane
    # layout for free (no in-kernel relayouts, no per-channel tiny matmuls).
    zc = jnp.einsum('nkds,ck->ncds', x.reshape(N, Cin, Di, Hi * Wi), w1)
    zc = zc + b1[None, :, None, None]
    zc = zc.reshape(N, C * Di, Hi * Wi).astype(interp_dtype)

    # Interpolation operators: depth kept separable (tiled grid axis), H and W
    # fused into one kron matrix so the in-kernel HW upsample is one matmul.
    # TODO(synk): for very large Hi*Wi exploit the ~4-sparse band structure of
    # kron(Mh, Mw) (or keep H/W separable) to cut MXU FLOPs and VMEM further.
    md = jnp.asarray(_trilinear_matrix(Di, Do), dtype=interp_dtype)     # (Do, Di)
    mh = _trilinear_matrix(Hi, Ho)                                      # (Ho, Hi)
    mw = _trilinear_matrix(Wi, Wo)                                      # (Wo, Wi)
    mhw_t = jnp.asarray(np.kron(mh, mw).T, dtype=interp_dtype)          # (HiWi, HoWo)

    interp_bytes = jnp.dtype(interp_dtype).itemsize
    thw, td, vmem_limit = _choose_tiles(
        HiWi=Hi * Wi, HoWo=Ho * Wo, Do=Do, CDi=C * Di, num_out=num_out,
        interp_bytes=interp_bytes, thw_cap=thw_cap, td_cap=td_cap)

    grid = ((Ho * Wo) // thw, N, Do // td)   # hw outermost, depth innermost

    kernel = functools.partial(_pvp_kernel, C=C, Di=Di, num_out=num_out)
    smem = pltpu.MemorySpace.SMEM
    out = pl.pallas_call(
        kernel,
        out_shape=jax.ShapeDtypeStruct((N, num_out, Do, Ho * Wo), jnp.float32),
        grid=grid,
        in_specs=[
            pl.BlockSpec(memory_space=smem),                                  # wout_eff
            pl.BlockSpec(memory_space=smem),                                  # bout
            pl.BlockSpec((1, C * Di, Hi * Wi), lambda hw, n, d: (n, 0, 0)),   # conv slab
            pl.BlockSpec((Hi * Wi, thw), lambda hw, n, d: (0, hw)),           # kron(Mh,Mw)^T
            pl.BlockSpec((td, Di), lambda hw, n, d: (d, 0)),                  # Md tile
        ],
        out_specs=pl.BlockSpec((1, num_out, td, thw),
                               lambda hw, n, d: (n, 0, d, hw)),
        scratch_shapes=[pltpu.VMEM((C, Di, thw), interp_dtype)],
        compiler_params=pltpu.CompilerParams(
            dimension_semantics=("parallel", "parallel", "arbitrary"),
            vmem_limit_bytes=vmem_limit),
    )(wout_eff, bout.reshape(1, num_out), zc, mhw_t, md)

    # (N, num_out, Do, Ho*Wo) -> (N, num_out, Do, Ho, Wo): pure reshape, free.
    return out.reshape(N, num_out, Do, Ho, Wo)


# ----------------------------------------------------------------------------
# Plain-JAX reference (mirrors the PyTorch forward) and params
# ----------------------------------------------------------------------------
def pvp_reference(x, params, size):
    Di, Hi, Wi = x.shape[2], x.shape[3], x.shape[4]
    Do, Ho, Wo = size
    Md = jnp.asarray(_trilinear_matrix(Di, Do))
    Mh = jnp.asarray(_trilinear_matrix(Hi, Ho))
    Mw = jnp.asarray(_trilinear_matrix(Wi, Wo))
    y = jnp.einsum('ncdhw,oc->nodhw', x, params["w1"])
    y = y + params["b1"][None, :, None, None, None]
    y = jnp.einsum('ncdhw,Dd->ncDhw', y, Md)
    y = jnp.einsum('ncdhw,Hh->ncdHw', y, Mh)
    y = jnp.einsum('ncdhw,Ww->ncdhW', y, Mw)
    y = jnp.maximum(y, 0.0)
    ycat = jnp.concatenate([y, y, y, y], axis=1)
    out = jnp.einsum('ncdhw,oc->nodhw', ycat, params["wout"])
    return out + params["bout"][None, :, None, None, None]


def init_params(key, num_in, num_out):
    intermediate_out = num_in // 4
    k1, k2, k3, k4 = jax.random.split(key, 4)
    return {
        "w1": 0.1 * jax.random.normal(k1, (intermediate_out, num_in), jnp.float32),
        "b1": 0.1 * jax.random.normal(k2, (intermediate_out,), jnp.float32),
        "wout": 0.1 * jax.random.normal(k3, (num_out, num_in), jnp.float32),
        "bout": 0.1 * jax.random.normal(k4, (num_out,), jnp.float32),
        # blocks 2-4 exist in __init__ but are dead code in forward(); omitted.
    }


if __name__ == "__main__":
    num_in, num_out = 8, 4
    size = (16, 16, 16)            # small stand-in for the default (96, 96, 96)
    N, Di, Hi, Wi = 2, 8, 8, 8

    key = jax.random.PRNGKey(0)
    kx, kp = jax.random.split(key)
    x = jax.random.normal(kx, (N, num_in, Di, Hi, Wi), jnp.float32)
    params = init_params(kp, num_in, num_out)

    ref = jax.block_until_ready(pvp_reference(x, params, size))

    # Exact f32 path with small tile caps -> multi-tile (hw, n, d) grid, so the
    # phased pipeline / resident-scratch reuse is exercised at this tiny size.
    out_f32 = jax.block_until_ready(
        pvp_forward(x, params, size, interp_dtype=jnp.float32,
                    thw_cap=128, td_cap=8))
    # Default (performance) path: bf16-streamed operators, generation-aware tiles.
    out_bf16 = jax.block_until_ready(pvp_forward(x, params, size))

    assert out_f32.shape == (N, num_out) + size
    assert out_bf16.shape == (N, num_out) + size
    assert jnp.isfinite(out_f32).all() and jnp.isfinite(out_bf16).all()
    err_f32 = float(jnp.max(jnp.abs(out_f32 - ref)))
    err_bf16 = float(jnp.max(jnp.abs(out_bf16 - ref)))
    assert jnp.allclose(out_f32, ref, atol=1e-4, rtol=1e-4), err_f32
    assert jnp.allclose(out_bf16, ref, atol=8e-2, rtol=8e-2), err_bf16
    print("KERNEL_OK")
</pallas_src>

<mosaic_0001>
module attributes {stable_mosaic.version = 11 : i64} {
  func.func @_pvp_kernel(%arg0: i32, %arg1: i32, %arg2: i32, %arg3: memref<4x2xf32, #tpu.memory_space<smem>>, %arg4: memref<1x4xf32, #tpu.memory_space<smem>>, %arg5: memref<1x16x64xf32, #tpu.memory_space<vmem>>, %arg6: memref<64x128xf32, #tpu.memory_space<vmem>>, %arg7: memref<8x8xf32, #tpu.memory_space<vmem>>, %arg8: memref<1x4x8x128xf32, #tpu.memory_space<vmem>>, %arg9: memref<2x8x128xf32, #tpu.memory_space<vmem>>) attributes {dimension_semantics = [#tpu.dimension_semantics<parallel>, #tpu.dimension_semantics<parallel>, #tpu.dimension_semantics<arbitrary>], iteration_bounds = array<i64: 2, 2, 2>, scalar_prefetch = 0 : i64, scratch_operands = 1 : i64, tpu.core_type = #tpu.core_type<tc>, window_params = [{transform_indices = @transform_0, window_bounds = array<i64: 4, 2>}, {transform_indices = @transform_1, window_bounds = array<i64: 1, 4>}, {transform_indices = @transform_2, window_bounds = array<i64: 1, 16, 64>}, {transform_indices = @transform_3, window_bounds = array<i64: 64, 128>}, {transform_indices = @transform_4, window_bounds = array<i64: 8, 8>}, {transform_indices = @transform_5, window_bounds = array<i64: 1, 4, 8, 128>}]} {
    %c0_i32 = arith.constant 0 : i32
    %0 = arith.cmpi eq, %arg2, %c0_i32 : i32
    %1 = arith.extui %0 : i1 to i32
    %c0_i32_0 = arith.constant 0 : i32
    %2 = arith.cmpi ne, %1, %c0_i32_0 : i32
    scf.if %2 {
      %c0_48 = arith.constant 0 : index
      %c0_49 = arith.constant 0 : index
      %c0_50 = arith.constant 0 : index
      %66 = vector.load %arg5[%c0_48, %c0_49, %c0_50] : memref<1x16x64xf32, #tpu.memory_space<vmem>>, vector<1x16x64xf32>
      %67 = vector.shape_cast %66 : vector<1x16x64xf32> to vector<16x64xf32>
      %c0_51 = arith.constant 0 : index
      %c0_52 = arith.constant 0 : index
      %68 = vector.load %arg6[%c0_51, %c0_52] : memref<64x128xf32, #tpu.memory_space<vmem>>, vector<64x128xf32>
      %cst_53 = arith.constant dense<0.000000e+00> : vector<16x128xf32>
      %69 = tpu.matmul %67, %68, %cst_53 {dimension_numbers = #tpu.dot_dimension_numbers<[1], [0], [0], [1], [0, 0, 1, 1], [], []>} : vector<16x64xf32>, vector<64x128xf32>, vector<16x128xf32> -> vector<16x128xf32>
      %70 = vector.extract_strided_slice %69 {offsets = [0, 0], sizes = [8, 128], strides = [1, 1]} : vector<16x128xf32> to vector<8x128xf32>
      %c0_54 = arith.constant 0 : index
      %c0_55 = arith.constant 0 : index
      %c0_56 = arith.constant 0 : index
      %71 = vector.load %arg9[%c0_54, %c0_55, %c0_56] : memref<2x8x128xf32, #tpu.memory_space<vmem>>, vector<1x8x128xf32>
      %72 = vector.shape_cast %71 : vector<1x8x128xf32> to vector<8x128xf32>
      %73 = vector.shape_cast %70 : vector<8x128xf32> to vector<1x8x128xf32>
      tpu.vector_store %arg9[%c0_54, %c0_55, %c0_56], %73 {strides = array<i32>} : memref<2x8x128xf32, #tpu.memory_space<vmem>>, vector<1x8x128xf32>,
      %74 = vector.extract_strided_slice %69 {offsets = [8, 0], sizes = [8, 128], strides = [1, 1]} : vector<16x128xf32> to vector<8x128xf32>
      %c1_57 = arith.constant 1 : index
      %c0_58 = arith.constant 0 : index
      %c0_59 = arith.constant 0 : index
      %75 = vector.load %arg9[%c1_57, %c0_58, %c0_59] : memref<2x8x128xf32, #tpu.memory_space<vmem>>, vector<1x8x128xf32>
      %76 = vector.shape_cast %75 : vector<1x8x128xf32> to vector<8x128xf32>
      %77 = vector.shape_cast %74 : vector<8x128xf32> to vector<1x8x128xf32>
      tpu.vector_store %arg9[%c1_57, %c0_58, %c0_59], %77 {strides = array<i32>} : memref<2x8x128xf32, #tpu.memory_space<vmem>>, vector<1x8x128xf32>,
    } else {
    }
    %c0 = arith.constant 0 : index
    %c0_1 = arith.constant 0 : index
    %3 = vector.load %arg7[%c0, %c0_1] : memref<8x8xf32, #tpu.memory_space<vmem>>, vector<8x8xf32>
    %c0_2 = arith.constant 0 : index
    %c0_3 = arith.constant 0 : index
    %c0_4 = arith.constant 0 : index
    %4 = vector.load %arg9[%c0_2, %c0_3, %c0_4] : memref<2x8x128xf32, #tpu.memory_space<vmem>>, vector<1x8x128xf32>
    %5 = vector.shape_cast %4 : vector<1x8x128xf32> to vector<8x128xf32>
    %cst = arith.constant dense<0.000000e+00> : vector<8x128xf32>
    %6 = tpu.matmul %3, %5, %cst {dimension_numbers = #tpu.dot_dimension_numbers<[1], [0], [0], [1], [0, 0, 1, 1], [], []>} : vector<8x8xf32>, vector<8x128xf32>, vector<8x128xf32> -> vector<8x128xf32>
    %cst_5 = arith.constant 0.000000e+00 : f32
    %7 = vector.broadcast %cst_5 : f32 to vector<8x128xf32>
    %8 = arith.maximumf %6, %7 : vector<8x128xf32>
    %c0_6 = arith.constant 0 : index
    %c0_7 = arith.constant 0 : index
    %9 = memref.load %arg3[%c0_6, %c0_7] : memref<4x2xf32, #tpu.memory_space<smem>>
    %10 = vector.broadcast %9 : f32 to vector<8x128xf32>
    %11 = arith.mulf %8, %10 : vector<8x128xf32>
    %c1 = arith.constant 1 : index
    %c0_8 = arith.constant 0 : index
    %12 = memref.load %arg3[%c1, %c0_8] : memref<4x2xf32, #tpu.memory_space<smem>>
    %13 = vector.broadcast %12 : f32 to vector<8x128xf32>
    %14 = arith.mulf %8, %13 : vector<8x128xf32>
    %c2 = arith.constant 2 : index
    %c0_9 = arith.constant 0 : index
    %15 = memref.load %arg3[%c2, %c0_9] : memref<4x2xf32, #tpu.memory_space<smem>>
    %16 = vector.broadcast %15 : f32 to vector<8x128xf32>
    %17 = arith.mulf %8, %16 : vector<8x128xf32>
    %c3 = arith.constant 3 : index
    %c0_10 = arith.constant 0 : index
    %18 = memref.load %arg3[%c3, %c0_10] : memref<4x2xf32, #tpu.memory_space<smem>>
    %19 = vector.broadcast %18 : f32 to vector<8x128xf32>
    %20 = arith.mulf %8, %19 : vector<8x128xf32>
    %c1_11 = arith.constant 1 : index
    %c0_12 = arith.constant 0 : index
    %c0_13 = arith.constant 0 : index
    %21 = vector.load %arg9[%c1_11, %c0_12, %c0_13] : memref<2x8x128xf32, #tpu.memory_space<vmem>>, vector<1x8x128xf32>
    %22 = vector.shape_cast %21 : vector<1x8x128xf32> to vector<8x128xf32>
    %cst_14 = arith.constant dense<0.000000e+00> : vector<8x128xf32>
    %23 = tpu.matmul %3, %22, %cst_14 {dimension_numbers = #tpu.dot_dimension_numbers<[1], [0], [0], [1], [0, 0, 1, 1], [], []>} : vector<8x8xf32>, vector<8x128xf32>, vector<8x128xf32> -> vector<8x128xf32>
    %cst_15 = arith.constant 0.000000e+00 : f32
    %24 = vector.broadcast %cst_15 : f32 to vector<8x128xf32>
    %25 = arith.maximumf %23, %24 : vector<8x128xf32>
    %c0_16 = arith.constant 0 : index
    %c1_17 = arith.constant 1 : index
    %26 = memref.load %arg3[%c0_16, %c1_17] : memref<4x2xf32, #tpu.memory_space<smem>>
    %27 = vector.broadcast %26 : f32 to vector<8x128xf32>
    %28 = arith.mulf %25, %27 : vector<8x128xf32>
    %29 = arith.addf %11, %28 : vector<8x128xf32>
    %c1_18 = arith.constant 1 : index
    %c1_19 = arith.constant 1 : index
    %30 = memref.load %arg3[%c1_18, %c1_19] : memref<4x2xf32, #tpu.memory_space<smem>>
    %31 = vector.broadcast %30 : f32 to vector<8x128xf32>
    %32 = arith.mulf %25, %31 : vector<8x128xf32>
    %33 = arith.addf %14, %32 : vector<8x128xf32>
    %c2_20 = arith.constant 2 : index
    %c1_21 = arith.constant 1 : index
    %34 = memref.load %arg3[%c2_20, %c1_21] : memref<4x2xf32, #tpu.memory_space<smem>>
    %35 = vector.broadcast %34 : f32 to vector<8x128xf32>
    %36 = arith.mulf %25, %35 : vector<8x128xf32>
    %37 = arith.addf %17, %36 : vector<8x128xf32>
    %c3_22 = arith.constant 3 : index
    %c1_23 = arith.constant 1 : index
    %38 = memref.load %arg3[%c3_22, %c1_23] : memref<4x2xf32, #tpu.memory_space<smem>>
    %39 = vector.broadcast %38 : f32 to vector<8x128xf32>
    %40 = arith.mulf %25, %39 : vector<8x128xf32>
    %41 = arith.addf %20, %40 : vector<8x128xf32>
    %c0_24 = arith.constant 0 : index
    %c0_25 = arith.constant 0 : index
    %42 = memref.load %arg4[%c0_24, %c0_25] : memref<1x4xf32, #tpu.memory_space<smem>>
    %43 = vector.broadcast %42 : f32 to vector<8x128xf32>
    %44 = arith.addf %29, %43 : vector<8x128xf32>
    %c0_26 = arith.constant 0 : index
    %c0_27 = arith.constant 0 : index
    %c0_28 = arith.constant 0 : index
    %c0_29 = arith.constant 0 : index
    %45 = vector.load %arg8[%c0_26, %c0_27, %c0_28, %c0_29] : memref<1x4x8x128xf32, #tpu.memory_space<vmem>>, vector<1x1x8x128xf32>
    %46 = vector.shape_cast %45 : vector<1x1x8x128xf32> to vector<8x128xf32>
    %47 = vector.shape_cast %44 : vector<8x128xf32> to vector<1x1x8x128xf32>
    tpu.vector_store %arg8[%c0_26, %c0_27, %c0_28, %c0_29], %47 {strides = array<i32>} : memref<1x4x8x128xf32, #tpu.memory_space<vmem>>, vector<1x1x8x128xf32>,
    %c0_30 = arith.constant 0 : index
    %c1_31 = arith.constant 1 : index
    %48 = memref.load %arg4[%c0_30, %c1_31] : memref<1x4xf32, #tpu.memory_space<smem>>
    %49 = vector.broadcast %48 : f32 to vector<8x128xf32>
    %50 = arith.addf %33, %49 : vector<8x128xf32>
    %c0_32 = arith.constant 0 : index
    %c1_33 = arith.constant 1 : index
    %c0_34 = arith.constant 0 : index
    %c0_35 = arith.constant 0 : index
    %51 = vector.load %arg8[%c0_32, %c1_33, %c0_34, %c0_35] : memref<1x4x8x128xf32, #tpu.memory_space<vmem>>, vector<1x1x8x128xf32>
    %52 = vector.shape_cast %51 : vector<1x1x8x128xf32> to vector<8x128xf32>
    %53 = vector.shape_cast %50 : vector<8x128xf32> to vector<1x1x8x128xf32>
    tpu.vector_store %arg8[%c0_32, %c1_33, %c0_34, %c0_35], %53 {strides = array<i32>} : memref<1x4x8x128xf32, #tpu.memory_space<vmem>>, vector<1x1x8x128xf32>,
    %c0_36 = arith.constant 0 : index
    %c2_37 = arith.constant 2 : index
    %54 = memref.load %arg4[%c0_36, %c2_37] : memref<1x4xf32, #tpu.memory_space<smem>>
    %55 = vector.broadcast %54 : f32 to vector<8x128xf32>
    %56 = arith.addf %37, %55 : vector<8x128xf32>
    %c0_38 = arith.constant 0 : index
    %c2_39 = arith.constant 2 : index
    %c0_40 = arith.constant 0 : index
    %c0_41 = arith.constant 0 : index
    %57 = vector.load %arg8[%c0_38, %c2_39, %c0_40, %c0_41] : memref<1x4x8x128xf32, #tpu.memory_space<vmem>>, vector<1x1x8x128xf32>
    %58 = vector.shape_cast %57 : vector<1x1x8x128xf32> to vector<8x128xf32>
    %59 = vector.shape_cast %56 : vector<8x128xf32> to vector<1x1x8x128xf32>
    tpu.vector_store %arg8[%c0_38, %c2_39, %c0_40, %c0_41], %59 {strides = array<i32>} : memref<1x4x8x128xf32, #tpu.memory_space<vmem>>, vector<1x1x8x128xf32>,
    %c0_42 = arith.constant 0 : index
    %c3_43 = arith.constant 3 : index
    %60 = memref.load %arg4[%c0_42, %c3_43] : memref<1x4xf32, #tpu.memory_space<smem>>
    %61 = vector.broadcast %60 : f32 to vector<8x128xf32>
    %62 = arith.addf %41, %61 : vector<8x128xf32>
    %c0_44 = arith.constant 0 : index
    %c3_45 = arith.constant 3 : index
    %c0_46 = arith.constant 0 : index
    %c0_47 = arith.constant 0 : index
    %63 = vector.load %arg8[%c0_44, %c3_45, %c0_46, %c0_47] : memref<1x4x8x128xf32, #tpu.memory_space<vmem>>, vector<1x1x8x128xf32>
    %64 = vector.shape_cast %63 : vector<1x1x8x128xf32> to vector<8x128xf32>
    %65 = vector.shape_cast %62 : vector<8x128xf32> to vector<1x1x8x128xf32>
    tpu.vector_store %arg8[%c0_44, %c3_45, %c0_46, %c0_47], %65 {strides = array<i32>} : memref<1x4x8x128xf32, #tpu.memory_space<vmem>>, vector<1x1x8x128xf32>,
    return
  }
  func.func @transform_0(%arg0: i32, %arg1: i32, %arg2: i32) -> (i32, i32) {
    %c0_i32 = arith.constant 0 : i32
    %c0_i32_0 = arith.constant 0 : i32
    %c0_i32_1 = arith.constant 0 : i32
    return %c0_i32, %c0_i32_0 : i32, i32
  }
  func.func @transform_1(%arg0: i32, %arg1: i32, %arg2: i32) -> (i32, i32) {
    %c0_i32 = arith.constant 0 : i32
    %c0_i32_0 = arith.constant 0 : i32
    %c0_i32_1 = arith.constant 0 : i32
    return %c0_i32, %c0_i32_0 : i32, i32
  }
  func.func @transform_2(%arg0: i32, %arg1: i32, %arg2: i32) -> (i32, i32, i32) {
    %c0_i32 = arith.constant 0 : i32
    %c0_i32_0 = arith.constant 0 : i32
    %c0_i32_1 = arith.constant 0 : i32
    return %arg1, %c0_i32, %c0_i32_0 : i32, i32, i32
  }
  func.func @transform_3(%arg0: i32, %arg1: i32, %arg2: i32) -> (i32, i32) {
    %c0_i32 = arith.constant 0 : i32
    %c0_i32_0 = arith.constant 0 : i32
    return %c0_i32, %arg0 : i32, i32
  }
  func.func @transform_4(%arg0: i32, %arg1: i32, %arg2: i32) -> (i32, i32) {
    %c0_i32 = arith.constant 0 : i32
    %c0_i32_0 = arith.constant 0 : i32
    return %arg2, %c0_i32 : i32, i32
  }
  func.func @transform_5(%arg0: i32, %arg1: i32, %arg2: i32) -> (i32, i32, i32, i32) {
    %c0_i32 = arith.constant 0 : i32
    %c0_i32_0 = arith.constant 0 : i32
    return %arg1, %c0_i32, %arg2, %arg0 : i32, i32, i32, i32
  }
}

</mosaic_0001>

<llo_original>
// kernel: tpu_custom_call.1
$region0: #{tpu_custom_call.1}
  #allocation0 [shape = 'u32[]', space=smem, size = 0x4, offset = 0x4, fixed_abs, tag = 'smem constant byte address 0x4 - core index']
  #allocation1 [shape = 'u32[72,128]{1,0:T(1,128)}', space=vmem, size = 0x9000, scoped, tag = 'internal scratch']
  #allocation2 [shape = 'f32[2,8,128]{2,1,0:T(8,128)}', space=vmem, size = 0x2000, scoped, tag = 'scratch operand']
  %s0 = inlined_call_operand.vmem [shape: f32[4,2], index: 0, kind: input, shape index: {}]
  %s1 = inlined_call_operand.vmem [shape: f32[1,4], index: 1, kind: input, shape index: {}]
  %s2 = inlined_call_operand.hbm [shape: f32[2,16,64], index: 2, kind: input, shape index: {}]
  %s3 = inlined_call_operand.hbm [shape: f32[64,256], index: 3, kind: input, shape index: {}]
  %s4 = inlined_call_operand.vmem [shape: f32[16,8], index: 4, kind: input, shape index: {}]
  %s5 = inlined_call_operand.hbm [shape: f32[2,4,16,256], index: 5, kind: output, shape index: {}]
  %s6 = sld [smem:[#allocation0]]
  $region73: #{tpu_custom_call.1} parent=0
    _
  %s8 = ssub.s32 1, %s6
  %s9 = scalar_select 0, %s8, %s6
  $region1: #{tpu_custom_call.1} parent=0
    #allocation3 [shape = 'u8[2048]{0}', space=smem, size = 0x800, scoped, tag = 'input window, operand 0, single buffered']
    #allocation4 [shape = 's32[2]{0}', space=sflag, size = 0x8, scoped, tag = 'scoped memory for tpu_custom_call.1']
    #allocation5 [shape = 's32[2]{0}', space=sflag, size = 0x8, scoped, tag = 'scoped memory for tpu_custom_call.1']
    #allocation6 [shape = 's32[2]{0}', space=sflag, size = 0x8, scoped, tag = 'scoped memory for tpu_custom_call.1']
    #allocation7 [shape = 'u8[512]{0}', space=smem, size = 0x200, scoped, tag = 'input window, operand 1, single buffered']
    #allocation8 [shape = 's32[1]{0}', space=sflag, size = 0x4, scoped, tag = 'scoped memory for tpu_custom_call.1']
    #allocation9 [shape = 'u8[16384]{0}', space=vmem, size = 0x4000, scoped, tag = 'input window, operand 2']
    #allocation10 [shape = 'u8[65536]{0}', space=vmem, size = 0x10000, scoped, tag = 'input window, operand 3']
    #allocation11 [shape = 's32[2]{0}', space=sflag, size = 0x8, scoped, tag = 'scoped memory for tpu_custom_call.1']
    #allocation12 [shape = 'u8[32768]{0}', space=vmem, size = 0x8000, scoped, tag = 'output window, operand 0']
    %10 = vsyncpa [#allocation6], 0
    %11 = vsyncpa [#allocation8], 0
    %12 = vsyncpa [#allocation4], 0
    %s13 = scalar_lea.sflag [#allocation4], 1
    %14 = vsyncpa %s13, 0
    %15 = vsyncpa [#allocation11], 0
    %s16 = scalar_lea.sflag [#allocation11], 1
    %17 = vsyncpa %s16, 0
    %18 = vsyncpa [#allocation5], 0
    %s19 = scalar_lea.sflag [#allocation5], 1
    %20 = vsyncpa %s19, 0
    loop: start=0, step=1, limit=10
    $region2: #{tpu_custom_call.1} parent=1 // loop_pre_header
      _
    $region3: #{tpu_custom_call.1} parent=1 // loop_header
      %s22 = sphi 0, %s26
      %p23 = scmp.ge.s32.totalorder %s22, 10
      %s29 = sphi 0, %s48
      %s30 = sphi 0, %s44
      %s31 = sphi 0, %s40
      %s32 = sphi 0, %s29
      %s33 = sphi 0, %s30
      %s34 = sphi 0, %s31
      %s35 = sphi 0, %s32
      %s36 = sphi 0, %s33
      %s37 = sphi 0, %s34
      %s49 = sphi 0, %s49
      %s51 = sphi 0, %s49
      %s52 = sphi 0, %s51
      %s66 = sphi 0, %s52
      %s70 = sphi 0, %s70
      %s72 = sphi 0, %s70
      %s73 = sphi 0, %s72
      %s87 = sphi 0, %s73
      %s93 = sphi 0, %s95
      %s96 = sphi 0, %s93
      %s97 = sphi 0, %s96
      %s113 = sphi 0, %s97
      %s119 = sphi 0, %s121
      %s122 = sphi 0, %s119
      %s123 = sphi 0, %s122
      %s139 = sphi 0, %s123
      %s145 = sphi 0, %s147
      %s148 = sphi 0, %s145
      %s149 = sphi 0, %s148
      %s165 = sphi 0, %s149
      %s175 = sphi 0, %s177
      %s178 = sphi 0, %s175
      %s179 = sphi 0, %s178
      %s195 = sphi 0, %s179
    $region4: #{tpu_custom_call.1} parent=1 // loop_header_branch
      %25 = sbr.rel (%p23) target = $region8
    $region5: #{tpu_custom_call.1} parent=1 // loop_body
      %s27 = ssub.s32 %s22, 1
      %s28 = ssub.s32 %s22, 2
      %s38 = sadd.s32 1, %s31
      %p39 = scmp.ge.s32.totalorder %s38, 2
      %s40 = scalar_select %p39, 0, %s38
      %s41 = sadd.s32 1, %s30
      %s42 = scalar_select %p39, %s41, %s30
      %p43 = scmp.ge.s32.totalorder %s42, 2
      %s44 = scalar_select %p43, 0, %s42
      %s45 = sadd.s32 1, %s29
      %s46 = scalar_select %p43, %s45, %s29
      %p47 = scmp.ge.s32.totalorder %s46, 2
      %s48 = scalar_select %p47, 0, %s46
      %s50 = sadd.s32 %s49, 1
      %p53 = scmp.eq.s32.totalorder %s22, 7
      %p54 = scmp.ne.s32.totalorder %s49, %s51
      %p55 = scmp.eq.s32.totalorder %s22, 0
      %p56 = por %p54, %p55
      %p57 = scmp.ne.s32.totalorder %s49, %s51
      %p58 = scmp.eq.s32.totalorder %s27, 7
      %p59 = por %p57, %p58
      %p60 = scmp.ne.s32.totalorder %s51, %s52
      %p61 = scmp.eq.s32.totalorder %s27, 0
      %p62 = por %p60, %p61
      %p63 = scmp.ne.s32.totalorder %s51, %s52
      %p64 = scmp.eq.s32.totalorder %s28, 7
      %p65 = por %p63, %p64
      %p67 = scmp.ne.s32.totalorder %s52, %s66
      %p68 = scmp.eq.s32.totalorder %s28, 0
      %p69 = por %p67, %p68
      %s71 = sadd.s32 %s70, 1
      %p74 = scmp.eq.s32.totalorder %s22, 7
      %p75 = scmp.ne.s32.totalorder %s70, %s72
      %p76 = scmp.eq.s32.totalorder %s22, 0
      %p77 = por %p75, %p76
      %p78 = scmp.ne.s32.totalorder %s70, %s72
      %p79 = scmp.eq.s32.totalorder %s27, 7
      %p80 = por %p78, %p79
      %p81 = scmp.ne.s32.totalorder %s72, %s73
      %p82 = scmp.eq.s32.totalorder %s27, 0
      %p83 = por %p81, %p82
      %p84 = scmp.ne.s32.totalorder %s72, %s73
      %p85 = scmp.eq.s32.totalorder %s28, 7
      %p86 = por %p84, %p85
      %p88 = scmp.ne.s32.totalorder %s73, %s87
      %p89 = scmp.eq.s32.totalorder %s28, 0
      %p90 = por %p88, %p89
      %s91 = ssub.s32 %s30, %s44
      %p92 = scmp.eq.s32.totalorder %s91, 0
      %s94 = sadd.s32 %s93, 1
      %s95 = scalar_select %p92, %s93, %s94
      %p98 = pneg %p92
      %p99 = scmp.eq.s32.totalorder %s22, 7
      %p100 = por %p98, %p99
      %p101 = scmp.ne.s32.totalorder %s93, %s96
      %p102 = scmp.eq.s32.totalorder %s22, 0
      %p103 = por %p101, %p102
      %p104 = scmp.ne.s32.totalorder %s93, %s96
      %p105 = scmp.eq.s32.totalorder %s27, 7
      %p106 = por %p104, %p105
      %p107 = scmp.ne.s32.totalorder %s96, %s97
      %p108 = scmp.eq.s32.totalorder %s27, 0
      %p109 = por %p107, %p108
      %p110 = scmp.ne.s32.totalorder %s96, %s97
      %p111 = scmp.eq.s32.totalorder %s28, 7
      %p112 = por %p110, %p111
      %p114 = scmp.ne.s32.totalorder %s97, %s113
      %p115 = scmp.eq.s32.totalorder %s28, 0
      %p116 = por %p114, %p115
      %s117 = ssub.s32 %s29, %s48
      %p118 = scmp.eq.s32.totalorder %s117, 0
      %s120 = sadd.s32 %s119, 1
      %s121 = scalar_select %p118, %s119, %s120
      %p124 = pneg %p118
      %p125 = scmp.eq.s32.totalorder %s22, 7
      %p126 = por %p124, %p125
      %p127 = scmp.ne.s32.totalorder %s119, %s122
      %p128 = scmp.eq.s32.totalorder %s22, 0
      %p129 = por %p127, %p128
      %p130 = scmp.ne.s32.totalorder %s119, %s122
      %p131 = scmp.eq.s32.totalorder %s27, 7
      %p132 = por %p130, %p131
      %p133 = scmp.ne.s32.totalorder %s122, %s123
      %p134 = scmp.eq.s32.totalorder %s27, 0
      %p135 = por %p133, %p134
      %p136 = scmp.ne.s32.totalorder %s122, %s123
      %p137 = scmp.eq.s32.totalorder %s28, 7
      %p138 = por %p136, %p137
      %p140 = scmp.ne.s32.totalorder %s123, %s139
      %p141 = scmp.eq.s32.totalorder %s28, 0
      %p142 = por %p140, %p141
      %s143 = ssub.s32 %s31, %s40
      %p144 = scmp.eq.s32.totalorder %s143, 0
      %s146 = sadd.s32 %s145, 1
      %s147 = scalar_select %p144, %s145, %s146
      %p150 = pneg %p144
      %p151 = scmp.eq.s32.totalorder %s22, 7
      %p152 = por %p150, %p151
      %p153 = scmp.ne.s32.totalorder %s145, %s148
      %p154 = scmp.eq.s32.totalorder %s22, 0
      %p155 = por %p153, %p154
      %p156 = scmp.ne.s32.totalorder %s145, %s148
      %p157 = scmp.eq.s32.totalorder %s27, 7
      %p158 = por %p156, %p157
      %p159 = scmp.ne.s32.totalorder %s148, %s149
      %p160 = scmp.eq.s32.totalorder %s27, 0
      %p161 = por %p159, %p160
      %p162 = scmp.ne.s32.totalorder %s148, %s149
      %p163 = scmp.eq.s32.totalorder %s28, 7
      %p164 = por %p162, %p163
      %p166 = scmp.ne.s32.totalorder %s149, %s165
      %p167 = scmp.eq.s32.totalorder %s28, 0
      %p168 = por %p166, %p167
      %s169 = ssub.s32 %s30, %s44
      %s170 = ssub.s32 %s31, %s40
      %s171 = sor.u32 %s169, %s170
      %s172 = ssub.s32 %s29, %s48
      %s173 = sor.u32 %s171, %s172
      %p174 = scmp.eq.s32.totalorder %s173, 0
      %s176 = sadd.s32 %s175, 1
      %s177 = scalar_select %p174, %s175, %s176
      %p180 = pneg %p174
      %p181 = scmp.eq.s32.totalorder %s22, 7
      %p182 = por %p180, %p181
      %p183 = scmp.ne.s32.totalorder %s175, %s178
      %p184 = scmp.eq.s32.totalorder %s22, 0
      %p185 = por %p183, %p184
      %p186 = scmp.ne.s32.totalorder %s175, %s178
      %p187 = scmp.eq.s32.totalorder %s27, 7
      %p188 = por %p186, %p187
      %p189 = scmp.ne.s32.totalorder %s178, %s179
      %p190 = scmp.eq.s32.totalorder %s27, 0
      %p191 = por %p189, %p190
      %p192 = scmp.ne.s32.totalorder %s178, %s179
      %p193 = scmp.eq.s32.totalorder %s28, 7
      %p194 = por %p192, %p193
      %p196 = scmp.ne.s32.totalorder %s179, %s195
      %p197 = scmp.eq.s32.totalorder %s28, 0
      %p198 = por %p196, %p197
      %p199 = scmp.le.s32.totalorder 1, %s22
      %p200 = scmp.lt.s32.totalorder %s22, 9
      %p201 = pnand %p199, %p200
      %p202 = pneg %p201
      // Predicated region
      $region9: #{tpu_custom_call.1} parent=5 // pred_check
        _
      $region10: #{tpu_custom_call.1} parent=5 // pred_check_branch
        %204 = sbr.rel (%p201) target = $region12
      $region11: #{tpu_custom_call.1} parent=5 // pred_region
        %s205 = ssub.s32 %s22, 1
        // Predicated region
        $region13: #{tpu_custom_call.1} parent=11 // pred_check
          %p206 = pneg %p62
        $region14: #{tpu_custom_call.1} parent=11 // pred_check_branch
          %208 = sbr.rel (%p206) target = $region16
        $region15: #{tpu_custom_call.1} parent=11 // pred_region
          %210 = vsyncadd [#allocation6], 0
          %s212 = sshll.u32 %s0, 4
          %s213 = int_to_ptr.vmem [resolvable:$true] %s212
          %215 = dma.vmem_to_smem %s213, 64, [#allocation3], [#allocation6]
        $region16: #{tpu_custom_call.1} parent=11 // pred_fallthru
          _
        // Predicated region
        $region17: #{tpu_custom_call.1} parent=11 // pred_check
          %p216 = pneg %p83
        $region18: #{tpu_custom_call.1} parent=11 // pred_check_branch
          %218 = sbr.rel (%p216) target = $region20
        $region19: #{tpu_custom_call.1} parent=11 // pred_region
          %220 = vsyncadd [#allocation8], 0
          %s222 = sshll.u32 %s1, 4
          %s223 = int_to_ptr.vmem [resolvable:$true] %s222
          %225 = dma.vmem_to_smem %s223, 16, [#allocation7], [#allocation8]
        $region20: #{tpu_custom_call.1} parent=11 // pred_fallthru
          _
      $region12: #{tpu_custom_call.1} parent=5 // pred_fallthru
        _
      %p226 = scmp.lt.s32.totalorder %s22, 8
      // Predicated region
      $region21: #{tpu_custom_call.1} parent=5 // pred_check
        %p227 = pneg %p226
      $region22: #{tpu_custom_call.1} parent=5 // pred_check_branch
        %229 = sbr.rel (%p227) target = $region24
      $region23: #{tpu_custom_call.1} parent=5 // pred_region
        // Predicated region
        $region25: #{tpu_custom_call.1} parent=23 // pred_check
          %p230 = pneg %p103
        $region26: #{tpu_custom_call.1} parent=23 // pred_check_branch
          %232 = sbr.rel (%p230) target = $region28
        $region27: #{tpu_custom_call.1} parent=23 // pred_region
          %s233 = sand.u32 %s93, 1
          %s234 = scalar_lea.sflag [#allocation4], %s233
          %s235 = sand.u32 %s93, 1
          %s236 = smul.addr %s235, 16
          %s237 = scalar_lea.vmem [#allocation9], %s236
          %239 = vsyncadd %s234, 0
          %s240 = smul.addr %s30, 2
          %s241 = smul.addr %s240, 8
          %s242 = scalar_lea.hbm %s2, %s241
          %s243 = sshll.u32 %s242, 4
          %s244 = int_to_ptr.hbm [resolvable:$true] %s243
          %s245 = sshll.u32 %s237, 4
          %s246 = int_to_ptr.vmem [resolvable:$true] %s245
          %251 = dma.hbm_to_vmem [thread:$0]  %s244, 256, %s246, %s234, 128, 128, 8
        $region28: #{tpu_custom_call.1} parent=23 // pred_fallthru
          _
        // Predicated region
        $region29: #{tpu_custom_call.1} parent=23 // pred_check
          %p252 = pneg %p129
        $region30: #{tpu_custom_call.1} parent=23 // pred_check_branch
          %254 = sbr.rel (%p252) target = $region32
        $region31: #{tpu_custom_call.1} parent=23 // pred_region
          %s255 = sand.u32 %s119, 1
          %s256 = scalar_lea.sflag [#allocation11], %s255
          %s257 = sand.u32 %s119, 1
          %s258 = smul.addr %s257, 64
          %s259 = scalar_lea.vmem [#allocation10], %s258
          %261 = vsyncadd %s256, 0
          %s262 = smul.addr %s29, 8
          %s263 = scalar_lea.hbm %s3, %s262
          %s264 = sshll.u32 %s263, 4
          %s265 = int_to_ptr.hbm [resolvable:$true] %s264
          %s266 = sshll.u32 %s259, 4
          %s267 = int_to_ptr.vmem [resolvable:$true] %s266
          %272 = dma.hbm_to_vmem [thread:$0]  %s265, 1024, %s267, %s256, 256, 128, 8
        $region32: #{tpu_custom_call.1} parent=23 // pred_fallthru
          _
        // Predicated region
        $region33: #{tpu_custom_call.1} parent=23 // pred_check
          %p273 = pneg %p155
        $region34: #{tpu_custom_call.1} parent=23 // pred_check_branch
          %275 = sbr.rel (%p273) target = $region36
        $region35: #{tpu_custom_call.1} parent=23 // pred_region
          %p276 = scmp.lt.s32.totalorder %s31, 1
          %s277 = scalar_select %p276, %s31, 1
          %s278 = smul.addr %s277, 8
          %s279 = scalar_lea.vmem %s4, %s278
        $region36: #{tpu_custom_call.1} parent=23 // pred_fallthru
          _
      $region24: #{tpu_custom_call.1} parent=5 // pred_fallthru
        _
      %p280 = scmp.le.s32.totalorder 1, %s22
      %p281 = scmp.lt.s32.totalorder %s22, 9
      %p282 = pnand %p280, %p281
      %p283 = pneg %p282
      // Predicated region
      $region37: #{tpu_custom_call.1} parent=5 // pred_check
        _
      $region38: #{tpu_custom_call.1} parent=5 // pred_check_branch
        %285 = sbr.rel (%p282) target = $region40
      $region39: #{tpu_custom_call.1} parent=5 // pred_region
        %s286 = ssub.s32 %s22, 1
        // Predicated region
        $region41: #{tpu_custom_call.1} parent=39 // pred_check
          %p287 = pneg %p62
        $region42: #{tpu_custom_call.1} parent=39 // pred_check_branch
          %289 = sbr.rel (%p287) target = $region44
        $region43: #{tpu_custom_call.1} parent=39 // pred_region
          %291 = dma.done [#allocation6], 64
        $region44: #{tpu_custom_call.1} parent=39 // pred_fallthru
          _
        // Predicated region
        $region45: #{tpu_custom_call.1} parent=39 // pred_check
          %p292 = pneg %p83
        $region46: #{tpu_custom_call.1} parent=39 // pred_check_branch
          %294 = sbr.rel (%p292) target = $region48
        $region47: #{tpu_custom_call.1} parent=39 // pred_region
          %296 = dma.done [#allocation8], 16
        $region48: #{tpu_custom_call.1} parent=39 // pred_fallthru
          _
        %s297 = sand.u32 %s96, 1
        %s298 = scalar_lea.sflag [#allocation4], %s297
        %s299 = sand.u32 %s96, 1
        %s300 = smul.addr %s299, 16
        %s301 = scalar_lea.vmem [#allocation9], %s300
        // Predicated region
        $region49: #{tpu_custom_call.1} parent=39 // pred_check
          %p302 = pneg %p109
        $region50: #{tpu_custom_call.1} parent=39 // pred_check_branch
          %304 = sbr.rel (%p302) target = $region52
        $region51: #{tpu_custom_call.1} parent=39 // pred_region
          %306 = dma.done %s298, 256
        $region52: #{tpu_custom_call.1} parent=39 // pred_fallthru
          _
        %s307 = sand.u32 %s122, 1
        %s308 = scalar_lea.sflag [#allocation11], %s307
        %s309 = sand.u32 %s122, 1
        %s310 = smul.addr %s309, 64
        %s311 = scalar_lea.vmem [#allocation10], %s310
        // Predicated region
        $region53: #{tpu_custom_call.1} parent=39 // pred_check
          %p312 = pneg %p135
        $region54: #{tpu_custom_call.1} parent=39 // pred_check_branch
          %314 = sbr.rel (%p312) target = $region56
        $region55: #{tpu_custom_call.1} parent=39 // pred_region
          %316 = dma.done %s308, 1024
        $region56: #{tpu_custom_call.1} parent=39 // pred_fallthru
          _
        %317 = sfence
        %p318 = pneg %p62
        %p319 = pneg %p59
        %p320 = pneg %p83
        %p321 = pneg %p80
        %s322 = sand.u32 %s96, 1
        %s323 = scalar_lea.sflag [#allocation4], %s322
        %s324 = sand.u32 %s96, 1
        %s325 = smul.addr %s324, 16
        %s326 = scalar_lea.vmem [#allocation9], %s325
        %p327 = pneg %p109
        %p328 = pneg %p106
        %s329 = sand.u32 %s122, 1
        %s330 = scalar_lea.sflag [#allocation11], %s329
        %s331 = sand.u32 %s122, 1
        %s332 = smul.addr %s331, 64
        %s333 = scalar_lea.vmem [#allocation10], %s332
        %p334 = pneg %p135
        %p335 = pneg %p132
        %p336 = scmp.lt.s32.totalorder %s34, 1
        %s337 = scalar_select %p336, %s34, 1
        %s338 = smul.addr %s337, 8
        %s339 = scalar_lea.vmem %s4, %s338
        %p340 = pneg %p161
        %p341 = pneg %p158
        %p342 = pneg %p191
        %p343 = pneg %p188
        %s344 = sand.u32 %s178, 1
        %s345 = scalar_lea.sflag [#allocation5], %s344
        %s346 = sand.u32 %s178, 1
        %s347 = smul.addr %s346, 32
        %s348 = scalar_lea.vmem [#allocation12], %s347
        %p349 = scmp.lt.s32.totalorder %s34, 1
        %s350 = scalar_select %p349, %s34, 1
        %s351 = smul.addr %s350, 8
        %s352 = scalar_lea.vmem %s4, %s351
        %p353 = scmp.eq.s32.totalorder %s34, 0
        // Predicated region
        $region57: #{tpu_custom_call.1} parent=39 // pred_check
          %p354 = pneg %p353
        $region58: #{tpu_custom_call.1} parent=39 // pred_check_branch
          %356 = sbr.rel (%p354) target = $region60
        $region59: #{tpu_custom_call.1} parent=39 // pred_region
          %v357 = vld [vmem:[%s301] sm:$0xff]
          %v358 = vld [vmem:[%s301 + $0x8] sm:$0xff]
          %v359 = vld [vmem:[%s311] sm:$0xff]
          %v360 = vld [vmem:[%s311 + $0x8] sm:$0xff]
          %v361 = vld [vmem:[%s311 + $0x10] sm:$0xff]
          %v362 = vld [vmem:[%s311 + $0x18] sm:$0xff]
          %v363 = vld [vmem:[%s311 + $0x20] sm:$0xff]
          %v364 = vld [vmem:[%s311 + $0x28] sm:$0xff]
          %v365 = vld [vmem:[%s311 + $0x30] sm:$0xff]
          %v366 = vld [vmem:[%s311 + $0x38] sm:$0xff]
          %vm367 = vcmask 523264
          %v369 = vsel %vm367, %v357, 0
          %v372 = vsel %vm367, %v358, 0
          %374 = vmatpush.msra.mxu0 0.0
          %375 = vmatpush.msra.mxu0 0.0
          %376 = vmatpush.msra.mxu0 0.0
          %377 = vmatpush.msra.mxu0 0.0
          %378 = vmatpush.msra.mxu0 0.0
          %379 = vmatpush.msra.mxu0 0.0
          %380 = vmatpush.msra.mxu0 0.0
          %381 = vmatpush.msra.mxu0 0.0
          %382 = vmatpush.msra.mxu0 %v366
          %383 = vmatpush.msra.mxu0 %v365
          %384 = vmatpush.msra.mxu0 %v364
          %385 = vmatpush.msra.mxu0 %v363
          %386 = vmatpush.msra.mxu0 %v362
          %387 = vmatpush.msra.mxu0 %v361
          %388 = vmatpush.msra.mxu0 %v360
          %389 = vmatpush.msra.mxu0 %v359
          %390 = vmatmul.f32.gmra.mxu0 %v369
          %v391 = vpop.f32.mrf.mxu0
          %v392 = vadd.f32 0.0, %v391
          %393 = vmatmul.f32.gmra.mxu0 %v372
          %v394 = vpop.f32.mrf.mxu0
          %v395 = vadd.f32 0.0, %v394
          %396 = vdwg.mxu0
          %397 = vst [vmem:[#allocation2] sm:$0xff] %v392
          %s398 = scalar_lea.vmem [#allocation2], 8
          %399 = vst [vmem:[%s398] sm:$0xff] %v395
        $region60: #{tpu_custom_call.1} parent=39 // pred_fallthru
          _
        %v400 = vld [vmem:[%s352] sm:$0xff]
        %v401 = vld [vmem:[#allocation2] sm:$0xff]
        %vm402 = vcmask 64512
        %v404 = vsel %vm402, %v400, 0
        %406 = vmatpush.msra.mxu0 0.0
        %407 = vmatpush.msra.mxu0 0.0
        %408 = vmatpush.msra.mxu0 0.0
        %409 = vmatpush.msra.mxu0 0.0
        %410 = vmatpush.msra.mxu0 0.0
        %411 = vmatpush.msra.mxu0 0.0
        %412 = vmatpush.msra.mxu0 0.0
        %413 = vmatpush.msra.mxu0 0.0
        %414 = vmatpush.msra.mxu0 0.0
        %415 = vmatpush.msra.mxu0 0.0
        %416 = vmatpush.msra.mxu0 0.0
        %417 = vmatpush.msra.mxu0 0.0
        %418 = vmatpush.msra.mxu0 0.0
        %419 = vmatpush.msra.mxu0 0.0
        %420 = vmatpush.msra.mxu0 0.0
        %421 = vmatpush.msra.mxu0 %v401
        %422 = vmatmul.f32.gmra.mxu0 %v404
        %v423 = vpop.f32.mrf.mxu0
        %v424 = vadd.f32 0.0, %v423
        %425 = vdwg.mxu0
        %v426 = vmax.f32 %v424, 0.0
        %s427 = sld [smem:[#allocation3]]
        %v428 = vstv %s427
        %v429 = vmul.f32 %v426, %v428
        %s430 = sld [smem:[#allocation3 + $0x80]]
        %v431 = vstv %s430
        %v432 = vmul.f32 %v426, %v431
        %s433 = sld [smem:[#allocation3 + $0x100]]
        %v434 = vstv %s433
        %v435 = vmul.f32 %v426, %v434
        %s436 = sld [smem:[#allocation3 + $0x180]]
        %v437 = vstv %s436
        %v438 = vmul.f32 %v426, %v437
        %s439 = scalar_lea.vmem [#allocation2], 8
        %v440 = vld [vmem:[%s439] sm:$0xff]
        %441 = vmatpush.msra.mxu0 0.0
        %442 = vmatpush.msra.mxu0 0.0
        %443 = vmatpush.msra.mxu0 0.0
        %444 = vmatpush.msra.mxu0 0.0
        %445 = vmatpush.msra.mxu0 0.0
        %446 = vmatpush.msra.mxu0 0.0
        %447 = vmatpush.msra.mxu0 0.0
        %448 = vmatpush.msra.mxu0 0.0
        %449 = vmatpush.msra.mxu0 0.0
        %450 = vmatpush.msra.mxu0 0.0
        %451 = vmatpush.msra.mxu0 0.0
        %452 = vmatpush.msra.mxu0 0.0
        %453 = vmatpush.msra.mxu0 0.0
        %454 = vmatpush.msra.mxu0 0.0
        %455 = vmatpush.msra.mxu0 0.0
        %456 = vmatpush.msra.mxu0 %v440
        %457 = vmatmul.f32.gmra.mxu0 %v404
        %v458 = vpop.f32.mrf.mxu0
        %v459 = vadd.f32 0.0, %v458
        %460 = vdwg.mxu0
        %v461 = vmax.f32 %v459, 0.0
        %s462 = sld [smem:[#allocation3 + $0x1]]
        %v463 = vstv %s462
        %v464 = vmul.f32 %v461, %v463
        %v465 = vadd.f32 %v429, %v464
        %s466 = sld [smem:[#allocation3 + $0x81]]
        %v467 = vstv %s466
        %v468 = vmul.f32 %v461, %v467
        %v469 = vadd.f32 %v432, %v468
        %s470 = sld [smem:[#allocation3 + $0x101]]
        %v471 = vstv %s470
        %v472 = vmul.f32 %v461, %v471
        %v473 = vadd.f32 %v435, %v472
        %s474 = sld [smem:[#allocation3 + $0x181]]
        %v475 = vstv %s474
        %v476 = vmul.f32 %v461, %v475
        %v477 = vadd.f32 %v438, %v476
        %s478 = sld [smem:[#allocation7]]
        %v479 = vstv %s478
        %v480 = vadd.f32 %v465, %v479
        %481 = vst [vmem:[%s348] sm:$0xff] %v480
        %s482 = sld [smem:[#allocation7 + $0x1]]
        %v483 = vstv %s482
        %v484 = vadd.f32 %v469, %v483
        %s485 = scalar_lea.vmem %s348, 8 [#allocation12]
        %486 = vst [vmem:[%s485] sm:$0xff] %v484
        %s487 = sld [smem:[#allocation7 + $0x2]]
        %v488 = vstv %s487
        %v489 = vadd.f32 %v473, %v488
        %s490 = scalar_lea.vmem %s348, 16 [#allocation12]
        %491 = vst [vmem:[%s490] sm:$0xff] %v489
        %s492 = sld [smem:[#allocation7 + $0x3]]
        %v493 = vstv %s492
        %v494 = vadd.f32 %v477, %v493
        %s495 = scalar_lea.vmem %s348, 24 [#allocation12]
        %496 = vst [vmem:[%s495] sm:$0xff] %v494
        %s497 = sand.u32 %s178, 1
        %s498 = scalar_lea.sflag [#allocation5], %s497
        %s499 = sand.u32 %s178, 1
        %s500 = smul.addr %s499, 32
        %s501 = scalar_lea.vmem [#allocation12], %s500
        // Predicated region
        $region61: #{tpu_custom_call.1} parent=39 // pred_check
          %p502 = pneg %p188
        $region62: #{tpu_custom_call.1} parent=39 // pred_check_branch
          %504 = sbr.rel (%p502) target = $region64
        $region63: #{tpu_custom_call.1} parent=39 // pred_region
          %506 = vsyncadd %s498, 0
          %s507 = smul.addr %s34, 2
          %s508 = sadd.s32 %s32, %s507
          %s509 = smul.addr %s33, 16
          %s510 = sadd.s32 %s508, %s509
          %s511 = smul.addr %s510, 8
          %s512 = scalar_lea.hbm %s5, %s511
          %s513 = sshll.u32 %s501, 4
          %s514 = int_to_ptr.vmem [resolvable:$true] %s513
          %s515 = sshll.u32 %s512, 4
          %s516 = int_to_ptr.hbm [resolvable:$true] %s515
          %521 = dma.vmem_to_hbm [thread:$0]  %s514, 512, %s516, %s498, 128, 512, 8
        $region64: #{tpu_custom_call.1} parent=39 // pred_fallthru
          _
      $region40: #{tpu_custom_call.1} parent=5 // pred_fallthru
        _
      %p522 = scmp.le.s32.totalorder 2, %s22
      // Predicated region
      $region65: #{tpu_custom_call.1} parent=5 // pred_check
        %p523 = pneg %p522
      $region66: #{tpu_custom_call.1} parent=5 // pred_check_branch
        %525 = sbr.rel (%p523) target = $region68
      $region67: #{tpu_custom_call.1} parent=5 // pred_region
        %s526 = ssub.s32 %s22, 2
        // Predicated region
        $region69: #{tpu_custom_call.1} parent=67 // pred_check
          %p527 = pneg %p194
        $region70: #{tpu_custom_call.1} parent=67 // pred_check_branch
          %529 = sbr.rel (%p527) target = $region72
        $region71: #{tpu_custom_call.1} parent=67 // pred_region
          %s530 = sand.u32 %s179, 1
          %s531 = scalar_lea.sflag [#allocation5], %s530
          %s532 = sand.u32 %s179, 1
          %s533 = smul.addr %s532, 32
          %s534 = scalar_lea.vmem [#allocation12], %s533
          %536 = dma.done %s531, 512
        $region72: #{tpu_custom_call.1} parent=67 // pred_fallthru
          _
      $region68: #{tpu_custom_call.1} parent=5 // pred_fallthru
        _
    $region6: #{tpu_custom_call.1} parent=1 // loop_footer
      %s26 = sadd.s32 1, %s22
    $region7: #{tpu_custom_call.1} parent=1 // loop_footer_branch
      %21 = sbr.rel target = $region3
    $region8: #{tpu_custom_call.1} parent=1 // loop_exit
      _
    %537 = vsyncpa [#allocation4], 1
    %s538 = scalar_lea.sflag [#allocation4], 1
    %539 = vsyncpa %s538, 1
    %540 = vsyncpa [#allocation11], 1
    %s541 = scalar_lea.sflag [#allocation11], 1
    %542 = vsyncpa %s541, 1
    %543 = vsyncpa [#allocation5], 1
    %s544 = scalar_lea.sflag [#allocation5], 1
    %545 = vsyncpa %s544, 1
    %546 = vsyncpa [#allocation6], 1
    %s547 = scalar_lea.sflag [#allocation6], 1
    %548 = vsyncpa %s547, 1
    %549 = vsyncpa [#allocation8], 1

</llo_original>
